<compile_context>
chip_gen: v7x
topology: tpu7x:2x2x1
jax: 0.10.0
libtpu: 0.0.40
codegen_flags: <defaults>
</compile_context>

<pallas_src>
import jax
import jax.numpy as jnp
from jax.experimental import pallas as pl
from jax.experimental.pallas import tpu as pltpu


# --------------------------------------------------------------------------
# Kernel
# --------------------------------------------------------------------------
def _stg_kernel(x_ref, gates_ref, out_ref):
    # gates_ref is (1, tile_d); broadcasts over the sample rows of this tile.
    # Edge blocks may read garbage past N/D -- harmless, those lanes are
    # masked on store and never reduced over.
    out_ref[...] = x_ref[...] * gates_ref[...]


# --------------------------------------------------------------------------
# Tiling helpers
# --------------------------------------------------------------------------
def _round_up(x, m):
    return ((x + m - 1) // m) * m


def _vmem_capacity_bytes():
    """Physical VMEM per TensorCore for the current generation."""
    try:
        return int(pltpu.get_tpu_info().vmem_capacity_bytes)
    except Exception:  # pragma: no cover - defensive
        try:
            kind = jax.devices()[0].device_kind.lower()
        except Exception:
            kind = ""
        return (64 << 20) if "v7" in kind else (128 << 20)


def _default_tiles():
    """Per-stream block (elements) sized to the streaming-roofline plateau."""
    try:
        kind = jax.devices()[0].device_kind.lower()
    except Exception:  # pragma: no cover - defensive
        kind = ""
    if "v7" in kind:
        # v7x: 64 MiB VMEM, 2 TCs/chip, ~3.2 TB/s HBM.  ~2 MiB f32 blocks sit
        # on the measured BW plateau, keep double-buffered residency ~8-10 MiB
        # and give many grid steps for cross-core load balance.
        return 1024, 512
    # v5e / v6e: ~4 MiB f32 blocks already reach the 85-86% plateau; larger
    # blocks only grow exposed prologue/epilogue DMA.
    return 1024, 1024


def _fit_tile(extent, tile, align):
    """Align the tile and clamp it to the (aligned-up) extent."""
    tile = _round_up(max(int(tile), 1), align)
    return min(tile, _round_up(extent, align))


# --------------------------------------------------------------------------
# Forward wrapper
# --------------------------------------------------------------------------
def stochastic_gates_forward(x, mus, eps, *, tile_n=None, tile_d=None,
                             small_fallback_bytes=256 << 10):
    """Pallas forward pass of StochasticGates.

    x:   [N, D] (samples x features)
    mus: [D]    gate means (parameter)
    eps: [D]    standard-normal noise (matches torch.randn_like(self.mus))
    returns: (out [N, D], gates [D]) where out = x * clamp(mus + eps, 0, 1)
    """
    N, D = x.shape

    # Bernoulli relaxation (hard sigmoid), computed once in plain JAX.
    gates = jnp.clip(mus + eps, 0.0, 1.0)          # [D]

    # Tiny inputs: the fixed pallas_call launch + pipeline fill dominates; a
    # plain fused XLA multiply is faster and skips all tiling machinery.
    if N * D * x.dtype.itemsize < small_fallback_bytes:
        return x * gates.astype(x.dtype)[None, :], gates

    gates2 = gates.astype(x.dtype).reshape(1, D)   # [1, D] for broadcast

    dtn, dtd = _default_tiles()
    tile_n = dtn if tile_n is None else tile_n
    tile_d = dtd if tile_d is None else tile_d

    # (sublane, lane) alignment; sublane packing is dtype dependent:
    # f32 -> 8, bf16 -> 16, int8/fp8 -> 32.  Lane dim always 128.
    sublane = max(8, 32 // x.dtype.itemsize)
    tile_n = _fit_tile(N, tile_n, sublane)
    tile_d = _fit_tile(D, tile_d, 128)

    # No padding / trimming: cdiv grid, Pallas masks the partial edge blocks.
    grid = (pl.cdiv(N, tile_n), pl.cdiv(D, tile_d))

    # VMEM budget: 2 streams (x, out) x 2 double-buffers x block, plus the
    # (tiny) double-buffered gates row, ~30% headroom, capped at 90% of this
    # generation's physical VMEM.
    block_bytes = tile_n * tile_d * x.dtype.itemsize
    gate_bytes = tile_d * gates2.dtype.itemsize
    vmem_cap = int(0.9 * _vmem_capacity_bytes())
    vmem_limit = int((2 * 2 * block_bytes + 2 * gate_bytes) * 1.3)
    vmem_limit = min(max(vmem_limit, 16 << 20), vmem_cap)

    out = pl.pallas_call(
        _stg_kernel,
        out_shape=jax.ShapeDtypeStruct((N, D), x.dtype),
        grid=grid,
        in_specs=[
            pl.BlockSpec((tile_n, tile_d), lambda i, j: (i, j)),   # x tile
            pl.BlockSpec((1, tile_d), lambda i, j: (0, j)),        # gates row
        ],
        out_specs=pl.BlockSpec((tile_n, tile_d), lambda i, j: (i, j)),
        compiler_params=pltpu.CompilerParams(
            dimension_semantics=("parallel", "parallel"),
            vmem_limit_bytes=vmem_limit,
        ),
    )(x, gates2)

    return out, gates


def get_regularization(mus, sigma, lambda_):
    """lambda * sum(1 - erf(-mu / (sqrt(2) * sigma))) / 2  (plain-JAX glue)."""
    sqrt_2 = jnp.sqrt(jnp.float32(2.0))
    return lambda_ * jnp.sum(1.0 - jax.lax.erf(-mus / (sqrt_2 * sigma))) / 2.0


# --------------------------------------------------------------------------
# Demo / correctness check
# --------------------------------------------------------------------------
if __name__ == "__main__":
    # Small shapes consistent with the module: N samples x D features.
    N, D = 16, 128
    sigma, lambda_ = 0.5, 0.1

    key = jax.random.PRNGKey(0)
    k_x, k_eps = jax.random.split(key)

    x = jax.random.normal(k_x, (N, D), dtype=jnp.float32)
    # Deterministic parameter init mirroring __init__: mus = 0.5 * ones(D)
    mus = 0.5 * jnp.ones((D,), dtype=jnp.float32)
    # eps ~ N(0, 1), matching torch.randn_like(self.mus)
    eps = jax.random.normal(k_eps, (D,), dtype=jnp.float32)

    # Force the Pallas path even at demo size (disable the tiny-shape fallback).
    out, gates = stochastic_gates_forward(x, mus, eps, small_fallback_bytes=0)
    out = jax.block_until_ready(out)

    # Reference check in plain JAX.
    gates_ref = jnp.clip(mus + eps, 0.0, 1.0)
    ref = x * gates_ref[None, :]
    assert jnp.allclose(out, ref, atol=1e-6), "mismatch vs reference"
    assert jnp.allclose(gates, gates_ref, atol=1e-6), "gates mismatch"

    # Ragged / larger shape: exercises the cdiv grid + masked edge blocks
    # (no pad / trim HBM passes anymore).
    N2, D2 = 1000, 300
    x2 = jax.random.normal(k_x, (N2, D2), dtype=jnp.float32)
    mus2 = 0.5 * jnp.ones((D2,), dtype=jnp.float32)
    eps2 = jax.random.normal(k_eps, (D2,), dtype=jnp.float32)
    out2, _ = stochastic_gates_forward(x2, mus2, eps2)
    out2 = jax.block_until_ready(out2)
    ref2 = x2 * jnp.clip(mus2 + eps2, 0.0, 1.0)[None, :]
    assert jnp.allclose(out2, ref2, atol=1e-6), "mismatch vs reference (ragged)"

    # Regularization term (not part of the forward hot path, plain JAX).
    _ = jax.block_until_ready(get_regularization(mus, sigma, lambda_))

    print("KERNEL_OK")
</pallas_src>

<mosaic_0001>
module attributes {stable_mosaic.version = 11 : i64} {
  func.func @_stg_kernel(%arg0: i32, %arg1: i32, %arg2: memref<16x128xf32, #tpu.memory_space<vmem>>, %arg3: memref<1x128xf32, #tpu.memory_space<vmem>>, %arg4: memref<16x128xf32, #tpu.memory_space<vmem>>) attributes {dimension_semantics = [#tpu.dimension_semantics<parallel>, #tpu.dimension_semantics<parallel>], iteration_bounds = array<i64: 1, 1>, scalar_prefetch = 0 : i64, scratch_operands = 0 : i64, tpu.core_type = #tpu.core_type<tc>, window_params = [{transform_indices = @transform_0, window_bounds = array<i64: 16, 128>}, {transform_indices = @transform_1, window_bounds = array<i64: 1, 128>}, {transform_indices = @transform_2, window_bounds = array<i64: 16, 128>}]} {
    %c0 = arith.constant 0 : index
    %c0_0 = arith.constant 0 : index
    %0 = vector.load %arg2[%c0, %c0_0] : memref<16x128xf32, #tpu.memory_space<vmem>>, vector<16x128xf32>
    %c0_1 = arith.constant 0 : index
    %c0_2 = arith.constant 0 : index
    %1 = vector.load %arg3[%c0_1, %c0_2] : memref<1x128xf32, #tpu.memory_space<vmem>>, vector<1x128xf32>
    %2 = vector.broadcast %1 : vector<1x128xf32> to vector<16x128xf32>
    %3 = arith.mulf %0, %2 : vector<16x128xf32>
    %c0_3 = arith.constant 0 : index
    %c0_4 = arith.constant 0 : index
    %4 = vector.load %arg4[%c0_3, %c0_4] : memref<16x128xf32, #tpu.memory_space<vmem>>, vector<16x128xf32>
    tpu.vector_store %arg4[%c0_3, %c0_4], %3 {strides = array<i32>} : memref<16x128xf32, #tpu.memory_space<vmem>>, vector<16x128xf32>,
    return
  }
  func.func @transform_0(%arg0: i32, %arg1: i32) -> (i32, i32) {
    %c0_i32 = arith.constant 0 : i32
    return %arg0, %arg1 : i32, i32
  }
  func.func @transform_1(%arg0: i32, %arg1: i32) -> (i32, i32) {
    %c0_i32 = arith.constant 0 : i32
    %c0_i32_0 = arith.constant 0 : i32
    return %c0_i32, %arg1 : i32, i32
  }
  func.func @transform_2(%arg0: i32, %arg1: i32) -> (i32, i32) {
    %c0_i32 = arith.constant 0 : i32
    return %arg0, %arg1 : i32, i32
  }
}

</mosaic_0001>

<llo_original>
// kernel: tpu_custom_call.1
$region0: #{tpu_custom_call.1}
  #allocation0 [shape = 'u32[]', space=smem, size = 0x4, offset = 0x4, fixed_abs, tag = 'smem constant byte address 0x4 - core index']
  #allocation1 [shape = 'u32[144,128]{1,0:T(1,128)}', space=vmem, size = 0x12000, scoped, tag = 'internal scratch']
  %s0 = inlined_call_operand.hbm [shape: f32[16,128], index: 0, kind: input, shape index: {}]
  %s1 = inlined_call_operand.vmem [shape: f32[1,128], index: 1, kind: input, shape index: {}]
  %s2 = inlined_call_operand.hbm [shape: f32[16,128], index: 2, kind: output, shape index: {}]
  %s3 = sld [smem:[#allocation0]]
  $region22: #{tpu_custom_call.1} parent=0
    _
  %s5 = ssub.s32 1, %s3
  %s6 = scalar_select 0, %s5, %s3
  $region1: #{tpu_custom_call.1} parent=0
    #allocation2 [shape = 'u8[8192]{0}', space=vmem, size = 0x2000, scoped, tag = 'input window, operand 0, single buffered']
    #allocation3 [shape = 's32[1]{0}', space=sflag, size = 0x4, scoped, tag = 'scoped memory for tpu_custom_call.1']
    #allocation4 [shape = 's32[1]{0}', space=sflag, size = 0x4, scoped, tag = 'scoped memory for tpu_custom_call.1']
    #allocation5 [shape = 'u8[8192]{0}', space=vmem, size = 0x2000, scoped, tag = 'output window, operand 0, single buffered']
    %7 = vsyncpa [#allocation3], 0
    %8 = vsyncpa [#allocation4], 0
    // Predicated region
    $region2: #{tpu_custom_call.1} parent=1 // pred_check
      _
    $region3: #{tpu_custom_call.1} parent=1 // pred_check_branch
      %10 = sbr.rel (0) target = $region5
    $region4: #{tpu_custom_call.1} parent=1 // pred_region
      %s12 = ssub.s32 256, 256
      %13 = vsyncadd [#allocation3], %s12
      %s14 = sshll.u32 [#allocation2], 4
      %s15 = int_to_ptr.vmem [resolvable:$true] %s14
      %20 = dma.hbm_to_vmem [thread:$0]  %s0, 256, %s15, [#allocation3], 128, 128, 8
    $region5: #{tpu_custom_call.1} parent=1 // pred_fallthru
      _
    // Predicated region
    $region6: #{tpu_custom_call.1} parent=1 // pred_check
      _
    $region7: #{tpu_custom_call.1} parent=1 // pred_check_branch
      %22 = sbr.rel (0) target = $region9
    $region8: #{tpu_custom_call.1} parent=1 // pred_region
      _
    $region9: #{tpu_custom_call.1} parent=1 // pred_fallthru
      _
    // Predicated region
    $region10: #{tpu_custom_call.1} parent=1 // pred_check
      _
    $region11: #{tpu_custom_call.1} parent=1 // pred_check_branch
      %24 = sbr.rel (0) target = $region13
    $region12: #{tpu_custom_call.1} parent=1 // pred_region
      %25 = dma.done [#allocation3], 256
    $region13: #{tpu_custom_call.1} parent=1 // pred_fallthru
      _
    %v26 = vld [vmem:[#allocation2] sm:$0xff]
    %v27 = vld [vmem:[#allocation2 + $0x8] sm:$0xff]
    %v28 = vld [vmem:[%s1] sm:$0x1]
    %v30 = vlaneseq
    %v31 = vshrl.u32 %v30, 7
    %v32 = vsub.s32 0, %v31
    %v33 = vrot.slane %v28, %v32
    %v35 = vmul.f32 %v26, %v33
    %v36 = vmul.f32 %v27, %v33
    %37 = vst [vmem:[#allocation5] sm:$0xff] %v35
    %38 = vst [vmem:[#allocation5 + $0x8] sm:$0xff] %v36
    // Predicated region
    $region14: #{tpu_custom_call.1} parent=1 // pred_check
      _
    $region15: #{tpu_custom_call.1} parent=1 // pred_check_branch
      %40 = sbr.rel (0) target = $region17
    $region16: #{tpu_custom_call.1} parent=1 // pred_region
      %s42 = ssub.s32 256, 256
      %43 = vsyncadd [#allocation4], %s42
      %s44 = sshll.u32 [#allocation5], 4
      %s45 = int_to_ptr.vmem [resolvable:$true] %s44
      %50 = dma.vmem_to_hbm [thread:$0]  %s45, 256, %s2, [#allocation4], 128, 128, 8
    $region17: #{tpu_custom_call.1} parent=1 // pred_fallthru
      _
    // Predicated region
    $region18: #{tpu_custom_call.1} parent=1 // pred_check
      _
    $region19: #{tpu_custom_call.1} parent=1 // pred_check_branch
      %52 = sbr.rel (0) target = $region21
    $region20: #{tpu_custom_call.1} parent=1 // pred_region
      %53 = dma.done [#allocation4], 256
    $region21: #{tpu_custom_call.1} parent=1 // pred_fallthru
      _
    %54 = vsyncpa [#allocation3], 1
    %55 = vsyncpa [#allocation4], 1

</llo_original>
